<compile_context>
chip_gen: v5e
topology: v5e:2x2
jax: 0.10.0
libtpu: 0.0.40
codegen_flags: <defaults>
</compile_context>

<pallas_src>
import jax
import jax.numpy as jnp
from jax.experimental import pallas as pl
from jax.experimental.pallas import tpu as pltpu


def _cdiv(a, b):
    return -(-a // b)


def _round_up(x, m):
    return _cdiv(x, m) * m


def _make_kernel(*, n_rows, tile_r, chunk_r, tiles_per_split, need_mask):
    n_chunks = tile_r // chunk_r
    unroll = True if n_chunks <= 16 else 8

    def kernel(pred_ref, tgt_ref, l1_ref, epe_ref):
        s = pl.program_id(0)   # tile-split index ('parallel')
        j = pl.program_id(2)   # pixel-tile index within split (reduction axis)

        @pl.when(j == 0)
        def _():
            l1_ref[...] = jnp.zeros_like(l1_ref)
            epe_ref[...] = jnp.zeros_like(epe_ref)

        c, _, lanes = pred_ref.shape   # static block shape (C, tile_r, 128)

        if need_mask:
            # Rows of this block holding real pixels.  <= 0 for duplicated
            # (clamped) blocks of an uneven split, < tile_r for the ragged
            # tail.  Out-of-bounds block contents are unspecified, so diff is
            # masked before both reductions.
            rows_valid = n_rows - (s * tiles_per_split + j) * tile_r

        def body(ci, carry):
            l1_acc, epe_acc = carry
            r0 = pl.multiple_of(ci * chunk_r, chunk_r)
            p = pred_ref[:, pl.ds(r0, chunk_r), :].astype(jnp.float32)
            t = tgt_ref[:, pl.ds(r0, chunk_r), :].astype(jnp.float32)
            d = p - t
            if need_mask:
                rid = jax.lax.broadcasted_iota(jnp.int32, (1, chunk_r, 1), 1) + r0
                d = jnp.where(rid < rows_valid, d, 0.0)
            # L1 partial: fold channels + row groups into an (8,128) slab.
            # The reshape only regroups whole (8,128) tiles (chunk_r % 8 == 0),
            # so the reduction is pure elementwise VPU adds.
            l1_acc = l1_acc + jnp.sum(
                jnp.abs(d).reshape(c * chunk_r // 8, 8, lanes), axis=0)
            # EPE partial: per-pixel L2 norm over channels (leading-axis adds
            # -> VPU, sqrt -> EUP), then fold rows into (8,128).
            nrm = jnp.sqrt(jnp.sum(d * d, axis=0))           # (chunk_r, 128)
            epe_acc = epe_acc + jnp.sum(
                nrm.reshape(chunk_r // 8, 8, lanes), axis=0)
            return l1_acc, epe_acc

        zeros = jnp.zeros((8, lanes), jnp.float32)
        l1_acc, epe_acc = jax.lax.fori_loop(
            0, n_chunks, body, (zeros, zeros), unroll=unroll)

        # Accumulate into the resident output blocks (same block across j).
        l1_ref[...] = l1_ref[...] + l1_acc[None, None]
        epe_ref[...] = epe_ref[...] + epe_acc[None, None]

    return kernel


def l1_loss_pallas(output, target, *,
                   target_block_bytes=4 * 1024 * 1024,
                   chunk_rows=256,
                   n_split=2):
    """Returns [L1, EPE] as float32 scalars. output/target are NCHW."""
    assert output.shape == target.shape
    B, C, H, W = output.shape
    HW = H * W

    dt_bytes = jnp.dtype(output.dtype).itemsize
    # Sublane granularity: 8 for 4-byte dtypes, 16 for bf16/f16, 32 for int8/fp8.
    sub = max(8, 32 // dt_bytes)

    pred = output.reshape(B, C, HW)
    targ = target.reshape(B, C, HW)

    hw_padded = _round_up(HW, 128)
    if hw_padded // 128 < sub:
        # Very small spatial extent: pad to one full sublane group so no block
        # ever exceeds the array extent (negligible copy, < sub*128 pixels).
        hw_padded = sub * 128
    if hw_padded != HW:
        # TODO(synk): this pad is the only residual HBM copy; it triggers only
        # when H*W is not a multiple of 128 (or is tiny).  Equal zero pads
        # contribute 0 to both sums; true counts are used as denominators.
        pred = jnp.pad(pred, ((0, 0), (0, 0), (0, hw_padded - HW)))
        targ = jnp.pad(targ, ((0, 0), (0, 0), (0, hw_padded - HW)))
    n_rows = hw_padded // 128

    # Free reshapes (views): rows [b*C : b*C+C] of axis 0 are batch b's channels.
    pred3 = pred.reshape(B * C, n_rows, 128)
    targ3 = targ.reshape(B * C, n_rows, 128)

    # --- tile sizing --------------------------------------------------------
    floor_rows = (n_rows // sub) * sub                       # >= sub by construction
    chunk_r = min(_round_up(chunk_rows, sub), floor_rows)    # in-kernel loop chunk
    max_chunks_per_tile = floor_rows // chunk_r
    total_chunks = _cdiv(n_rows, chunk_r)

    # ~target_block_bytes per input per block; tile counts are balanced so the
    # last tile is never mostly padding (no whole-tile over-padding).
    rows_for_target = max(sub, target_block_bytes // (C * 128 * dt_bytes))
    chunks_per_tile = min(max(1, rows_for_target // chunk_r), max_chunks_per_tile)
    n_tiles = _cdiv(total_chunks, chunks_per_tile)
    chunks_per_tile = _cdiv(total_chunks, n_tiles)           # balance tiles
    tile_r = chunks_per_tile * chunk_r                       # <= n_rows
    n_tiles = _cdiv(total_chunks, chunks_per_tile)

    # 2-way split of the pixel-tile range so both v7x TensorCores get work even
    # when B == 1 (harmless on single-TC chips).
    n_split = n_split if n_tiles >= 2 else 1
    tiles_per_split = _cdiv(n_tiles, n_split)
    need_mask = (n_split * tiles_per_split * tile_r) > n_rows

    grid = (n_split, B, tiles_per_split)

    def in_map(s, b, j):
        # Clamp so duplicate blocks of an uneven split stay in bounds; their
        # contribution is masked to zero inside the kernel.
        return (b, jnp.minimum(s * tiles_per_split + j, n_tiles - 1), 0)

    in_spec = pl.BlockSpec((C, tile_r, 128), in_map)
    out_spec = pl.BlockSpec((1, 1, 8, 128), lambda s, b, j: (s, b, 0, 0))

    kernel = _make_kernel(n_rows=n_rows, tile_r=tile_r, chunk_r=chunk_r,
                          tiles_per_split=tiles_per_split, need_mask=need_mask)

    block_bytes = C * tile_r * 128 * dt_bytes
    # 2 inputs x 2 pipeline buffers + headroom for outputs / chunk temporaries;
    # ~24 MiB with the default 4 MiB-per-input target (fits v5e/v6e/v7x).
    vmem_limit = int(4 * block_bytes + (8 << 20))

    l1_parts, epe_parts = pl.pallas_call(
        kernel,
        out_shape=(jax.ShapeDtypeStruct((n_split, B, 8, 128), jnp.float32),
                   jax.ShapeDtypeStruct((n_split, B, 8, 128), jnp.float32)),
        grid_spec=pltpu.PrefetchScalarGridSpec(
            num_scalar_prefetch=0,
            grid=grid,
            in_specs=[in_spec, in_spec],
            out_specs=[out_spec, out_spec],
        ),
        compiler_params=pltpu.CompilerParams(
            dimension_semantics=("parallel", "parallel", "arbitrary"),
            vmem_limit_bytes=vmem_limit),
    )(pred3, targ3)

    n_elems = float(B * C * H * W)
    n_pixels = float(B * H * W)
    l1 = jnp.sum(l1_parts) / n_elems
    epe = jnp.sum(epe_parts) / n_pixels
    # TODO(synk): forward only (matches the nn.Module); no custom VJP defined.
    return [l1, epe]


if __name__ == "__main__":
    def _ref(o, t):
        o32 = o.astype(jnp.float32)
        t32 = t.astype(jnp.float32)
        l1 = jnp.mean(jnp.abs(o32 - t32))
        epe = jnp.mean(jnp.sqrt(jnp.sum((t32 - o32) ** 2, axis=1)))
        return l1, epe

    key = jax.random.PRNGKey(0)
    k = jax.random.split(key, 8)

    cases = [
        # 1) Tiny flow-like tensors, default tiling (single tile, tiny pad path).
        (jax.random.normal(k[0], (2, 2, 16, 16), jnp.float32),
         jax.random.normal(k[1], (2, 2, 16, 16), jnp.float32),
         dict()),
        # 2) Multi-tile accumulation + 2-way split + clamped/masked ragged tail
        #    (n_rows=18, tile_r=8 -> 3 real tiles split 2/2).
        (jax.random.normal(k[2], (2, 2, 48, 48), jnp.float32),
         jax.random.normal(k[3], (2, 2, 48, 48), jnp.float32),
         dict(target_block_bytes=8192, chunk_rows=8)),
        # 3) Multi-tile, exact 2-way split, no masking needed.
        (jax.random.normal(k[4], (2, 2, 64, 64), jnp.float32),
         jax.random.normal(k[5], (2, 2, 64, 64), jnp.float32),
         dict(target_block_bytes=8192, chunk_rows=8)),
        # 4) bf16 inputs (16-row sublane granularity; f32 in-kernel accumulation).
        (jax.random.normal(k[6], (2, 2, 32, 32), jnp.float32).astype(jnp.bfloat16),
         jax.random.normal(k[7], (2, 2, 32, 32), jnp.float32).astype(jnp.bfloat16),
         dict()),
    ]

    for i, (o, t, kwargs) in enumerate(cases):
        l1_v, epe_v = l1_loss_pallas(o, t, **kwargs)
        jax.block_until_ready(l1_v)
        jax.block_until_ready(epe_v)
        l1_r, epe_r = _ref(o, t)
        assert jnp.allclose(l1_v, l1_r, rtol=1e-5, atol=1e-6), (i, l1_v, l1_r)
        assert jnp.allclose(epe_v, epe_r, rtol=1e-5, atol=1e-6), (i, epe_v, epe_r)

    print("KERNEL_OK")
</pallas_src>

<mosaic_0001>
module attributes {stable_mosaic.version = 11 : i64} {
  func.func @kernel(%arg0: i32, %arg1: i32, %arg2: i32, %arg3: memref<2x8x128xf32, #tpu.memory_space<vmem>>, %arg4: memref<2x8x128xf32, #tpu.memory_space<vmem>>, %arg5: memref<1x1x8x128xf32, #tpu.memory_space<vmem>>, %arg6: memref<1x1x8x128xf32, #tpu.memory_space<vmem>>) attributes {dimension_semantics = [#tpu.dimension_semantics<parallel>, #tpu.dimension_semantics<parallel>, #tpu.dimension_semantics<arbitrary>], iteration_bounds = array<i64: 1, 2, 1>, scalar_prefetch = 0 : i64, scratch_operands = 0 : i64, tpu.core_type = #tpu.core_type<tc>, window_params = [{transform_indices = @transform_0, window_bounds = array<i64: 2, 8, 128>}, {transform_indices = @transform_1, window_bounds = array<i64: 2, 8, 128>}, {transform_indices = @transform_2, window_bounds = array<i64: 1, 1, 8, 128>}, {transform_indices = @transform_3, window_bounds = array<i64: 1, 1, 8, 128>}]} {
    %c0_i32 = arith.constant 0 : i32
    %0 = arith.cmpi eq, %arg2, %c0_i32 : i32
    %1 = arith.extui %0 : i1 to i32
    %c0_i32_0 = arith.constant 0 : i32
    %2 = arith.cmpi ne, %1, %c0_i32_0 : i32
    scf.if %2 {
      %cst_24 = arith.constant 0.000000e+00 : f32
      %28 = vector.broadcast %cst_24 : f32 to vector<1x1x8x128xf32>
      %c0_25 = arith.constant 0 : index
      %c0_26 = arith.constant 0 : index
      %c0_27 = arith.constant 0 : index
      %c0_28 = arith.constant 0 : index
      %29 = vector.load %arg5[%c0_25, %c0_26, %c0_27, %c0_28] : memref<1x1x8x128xf32, #tpu.memory_space<vmem>>, vector<1x1x8x128xf32>
      tpu.vector_store %arg5[%c0_25, %c0_26, %c0_27, %c0_28], %28 {strides = array<i32>} : memref<1x1x8x128xf32, #tpu.memory_space<vmem>>, vector<1x1x8x128xf32>,
      %cst_29 = arith.constant 0.000000e+00 : f32
      %30 = vector.broadcast %cst_29 : f32 to vector<1x1x8x128xf32>
      %c0_30 = arith.constant 0 : index
      %c0_31 = arith.constant 0 : index
      %c0_32 = arith.constant 0 : index
      %c0_33 = arith.constant 0 : index
      %31 = vector.load %arg6[%c0_30, %c0_31, %c0_32, %c0_33] : memref<1x1x8x128xf32, #tpu.memory_space<vmem>>, vector<1x1x8x128xf32>
      tpu.vector_store %arg6[%c0_30, %c0_31, %c0_32, %c0_33], %30 {strides = array<i32>} : memref<1x1x8x128xf32, #tpu.memory_space<vmem>>, vector<1x1x8x128xf32>,
    } else {
    }
    %cst = arith.constant 0.000000e+00 : f32
    %3 = vector.broadcast %cst : f32 to vector<8x128xf32>
    %c0_i32_1 = arith.constant 0 : i32
    %c8_i32 = arith.constant 8 : i32
    %4 = arith.muli %c0_i32_1, %c8_i32 : i32
    %5 = tpu.assume_multiple %4, 8 : i32
    %c0 = arith.constant 0 : index
    %6 = arith.index_cast %5 : i32 to index
    %c0_2 = arith.constant 0 : index
    %7 = vector.load %arg3[%c0, %6, %c0_2] : memref<2x8x128xf32, #tpu.memory_space<vmem>>, vector<2x8x128xf32>
    %c0_3 = arith.constant 0 : index
    %8 = arith.index_cast %5 : i32 to index
    %c0_4 = arith.constant 0 : index
    %9 = vector.load %arg4[%c0_3, %8, %c0_4] : memref<2x8x128xf32, #tpu.memory_space<vmem>>, vector<2x8x128xf32>
    %10 = arith.subf %7, %9 : vector<2x8x128xf32>
    %11 = math.absf %10 : vector<2x8x128xf32>
    %cst_5 = arith.constant dense<0.000000e+00> : vector<8x128xf32>
    %12 = vector.multi_reduction <add>, %11, %cst_5 [0] : vector<2x8x128xf32> to vector<8x128xf32>
    %13 = arith.addf %3, %12 : vector<8x128xf32>
    %14 = arith.mulf %10, %10 : vector<2x8x128xf32>
    %cst_6 = arith.constant dense<0.000000e+00> : vector<8x128xf32>
    %15 = vector.multi_reduction <add>, %14, %cst_6 [0] : vector<2x8x128xf32> to vector<8x128xf32>
    %16 = math.sqrt %15 : vector<8x128xf32>
    %17 = vector.shape_cast %16 : vector<8x128xf32> to vector<1x8x128xf32>
    %cst_7 = arith.constant dense<0.000000e+00> : vector<8x128xf32>
    %18 = vector.multi_reduction <add>, %17, %cst_7 [0] : vector<1x8x128xf32> to vector<8x128xf32>
    %19 = arith.addf %3, %18 : vector<8x128xf32>
    %c1_i32 = arith.constant 1 : i32
    %c0_8 = arith.constant 0 : index
    %c0_9 = arith.constant 0 : index
    %c0_10 = arith.constant 0 : index
    %c0_11 = arith.constant 0 : index
    %20 = vector.load %arg5[%c0_8, %c0_9, %c0_10, %c0_11] : memref<1x1x8x128xf32, #tpu.memory_space<vmem>>, vector<1x1x8x128xf32>
    %21 = vector.shape_cast %13 : vector<8x128xf32> to vector<1x1x8x128xf32>
    %22 = arith.addf %20, %21 : vector<1x1x8x128xf32>
    %c0_12 = arith.constant 0 : index
    %c0_13 = arith.constant 0 : index
    %c0_14 = arith.constant 0 : index
    %c0_15 = arith.constant 0 : index
    %23 = vector.load %arg5[%c0_12, %c0_13, %c0_14, %c0_15] : memref<1x1x8x128xf32, #tpu.memory_space<vmem>>, vector<1x1x8x128xf32>
    tpu.vector_store %arg5[%c0_12, %c0_13, %c0_14, %c0_15], %22 {strides = array<i32>} : memref<1x1x8x128xf32, #tpu.memory_space<vmem>>, vector<1x1x8x128xf32>,
    %c0_16 = arith.constant 0 : index
    %c0_17 = arith.constant 0 : index
    %c0_18 = arith.constant 0 : index
    %c0_19 = arith.constant 0 : index
    %24 = vector.load %arg6[%c0_16, %c0_17, %c0_18, %c0_19] : memref<1x1x8x128xf32, #tpu.memory_space<vmem>>, vector<1x1x8x128xf32>
    %25 = vector.shape_cast %19 : vector<8x128xf32> to vector<1x1x8x128xf32>
    %26 = arith.addf %24, %25 : vector<1x1x8x128xf32>
    %c0_20 = arith.constant 0 : index
    %c0_21 = arith.constant 0 : index
    %c0_22 = arith.constant 0 : index
    %c0_23 = arith.constant 0 : index
    %27 = vector.load %arg6[%c0_20, %c0_21, %c0_22, %c0_23] : memref<1x1x8x128xf32, #tpu.memory_space<vmem>>, vector<1x1x8x128xf32>
    tpu.vector_store %arg6[%c0_20, %c0_21, %c0_22, %c0_23], %26 {strides = array<i32>} : memref<1x1x8x128xf32, #tpu.memory_space<vmem>>, vector<1x1x8x128xf32>,
    return
  }
  func.func @transform_0(%arg0: i32, %arg1: i32, %arg2: i32) -> (i32, i32, i32) {
    %c1_i32 = arith.constant 1 : i32
    %0 = arith.muli %arg0, %c1_i32 : i32
    %1 = arith.addi %0, %arg2 : i32
    %c0_i32 = arith.constant 0 : i32
    %2 = arith.minsi %1, %c0_i32 : i32
    %c0_i32_0 = arith.constant 0 : i32
    %c0_i32_1 = arith.constant 0 : i32
    return %arg1, %2, %c0_i32_0 : i32, i32, i32
  }
  func.func @transform_1(%arg0: i32, %arg1: i32, %arg2: i32) -> (i32, i32, i32) {
    %c1_i32 = arith.constant 1 : i32
    %0 = arith.muli %arg0, %c1_i32 : i32
    %1 = arith.addi %0, %arg2 : i32
    %c0_i32 = arith.constant 0 : i32
    %2 = arith.minsi %1, %c0_i32 : i32
    %c0_i32_0 = arith.constant 0 : i32
    %c0_i32_1 = arith.constant 0 : i32
    return %arg1, %2, %c0_i32_0 : i32, i32, i32
  }
  func.func @transform_2(%arg0: i32, %arg1: i32, %arg2: i32) -> (i32, i32, i32, i32) {
    %c0_i32 = arith.constant 0 : i32
    %c0_i32_0 = arith.constant 0 : i32
    %c0_i32_1 = arith.constant 0 : i32
    return %arg0, %arg1, %c0_i32, %c0_i32_0 : i32, i32, i32, i32
  }
  func.func @transform_3(%arg0: i32, %arg1: i32, %arg2: i32) -> (i32, i32, i32, i32) {
    %c0_i32 = arith.constant 0 : i32
    %c0_i32_0 = arith.constant 0 : i32
    %c0_i32_1 = arith.constant 0 : i32
    return %arg0, %arg1, %c0_i32, %c0_i32_0 : i32, i32, i32, i32
  }
}

</mosaic_0001>

<llo_original>
// kernel: tpu_custom_call.1
$region0: #{tpu_custom_call.1}
  #allocation0 [shape = 'u32[]', space=smem, size = 0x4, offset = 0x4, fixed_abs, tag = 'smem constant byte address 0x4 - core index']
  #allocation1 [shape = 'u32[72,128]{1,0:T(1,128)}', space=vmem, size = 0x9000, scoped, tag = 'internal scratch']
  %s0 = inlined_call_operand.hbm [shape: f32[4,8,128], index: 0, kind: input, shape index: {}]
  %s1 = inlined_call_operand.hbm [shape: f32[4,8,128], index: 1, kind: input, shape index: {}]
  %s2 = inlined_call_operand.hbm [shape: f32[1,2,8,128], index: 2, kind: output, shape index: {0}]
  %s3 = inlined_call_operand.hbm [shape: f32[1,2,8,128], index: 3, kind: output, shape index: {1}]
  %4 = xla_tuple %s2, %s3
  %s5 = sld [smem:[#allocation0]]
  $region61: #{tpu_custom_call.1} parent=0
    _
  %s7 = ssub.s32 1, %s5
  %s8 = scalar_select 0, %s7, %s5
  $region1: #{tpu_custom_call.1} parent=0
    #allocation2 [shape = 'u8[16384]{0}', space=vmem, size = 0x4000, scoped, tag = 'input window, operand 0']
    #allocation3 [shape = 's32[2]{0}', space=sflag, size = 0x8, scoped, tag = 'scoped memory for tpu_custom_call.1']
    #allocation4 [shape = 's32[2]{0}', space=sflag, size = 0x8, scoped, tag = 'scoped memory for tpu_custom_call.1']
    #allocation5 [shape = 'u8[16384]{0}', space=vmem, size = 0x4000, scoped, tag = 'input window, operand 1']
    #allocation6 [shape = 's32[2]{0}', space=sflag, size = 0x8, scoped, tag = 'scoped memory for tpu_custom_call.1']
    #allocation7 [shape = 'u8[8192]{0}', space=vmem, size = 0x2000, scoped, tag = 'output window, operand 0']
    #allocation8 [shape = 'u8[8192]{0}', space=vmem, size = 0x2000, scoped, tag = 'output window, operand 1']
    #allocation9 [shape = 's32[2]{0}', space=sflag, size = 0x8, scoped, tag = 'scoped memory for tpu_custom_call.1']
    %9 = vsyncpa [#allocation3], 0
    %s10 = scalar_lea.sflag [#allocation3], 1
    %11 = vsyncpa %s10, 0
    %12 = vsyncpa [#allocation6], 0
    %s13 = scalar_lea.sflag [#allocation6], 1
    %14 = vsyncpa %s13, 0
    %15 = vsyncpa [#allocation4], 0
    %s16 = scalar_lea.sflag [#allocation4], 1
    %17 = vsyncpa %s16, 0
    %18 = vsyncpa [#allocation9], 0
    %s19 = scalar_lea.sflag [#allocation9], 1
    %20 = vsyncpa %s19, 0
    loop: start=0, step=1, limit=4
    $region2: #{tpu_custom_call.1} parent=1 // loop_pre_header
      _
    $region3: #{tpu_custom_call.1} parent=1 // loop_header
      %s22 = sphi 0, %s26
      %p23 = scmp.ge.s32.totalorder %s22, 4
      %s29 = sphi 0, %s48
      %s30 = sphi 0, %s44
      %s31 = sphi 0, %s40
      %s32 = sphi 0, %s29
      %s33 = sphi 0, %s30
      %s34 = sphi 0, %s31
      %s35 = sphi 0, %s32
      %s36 = sphi 0, %s33
      %s37 = sphi 0, %s34
      %s59 = sphi 0, %s61
      %s62 = sphi 0, %s59
      %s63 = sphi 0, %s62
      %s79 = sphi 0, %s63
      %s93 = sphi 0, %s95
      %s96 = sphi 0, %s93
      %s97 = sphi 0, %s96
      %s113 = sphi 0, %s97
      %s121 = sphi 0, %s123
      %s124 = sphi 0, %s121
      %s125 = sphi 0, %s124
      %s141 = sphi 0, %s125
      %s149 = sphi 0, %s151
      %s152 = sphi 0, %s149
      %s153 = sphi 0, %s152
      %s169 = sphi 0, %s153
    $region4: #{tpu_custom_call.1} parent=1 // loop_header_branch
      %25 = sbr.rel (%p23) target = $region8
    $region5: #{tpu_custom_call.1} parent=1 // loop_body
      %s27 = ssub.s32 %s22, 1
      %s28 = ssub.s32 %s22, 2
      %s38 = sadd.s32 1, %s31
      %p39 = scmp.ge.s32.totalorder %s38, 1
      %s40 = scalar_select %p39, 0, %s38
      %s41 = sadd.s32 1, %s30
      %s42 = scalar_select %p39, %s41, %s30
      %p43 = scmp.ge.s32.totalorder %s42, 2
      %s44 = scalar_select %p43, 0, %s42
      %s45 = sadd.s32 1, %s29
      %s46 = scalar_select %p43, %s45, %s29
      %p47 = scmp.ge.s32.totalorder %s46, 1
      %s48 = scalar_select %p47, 0, %s46
      %s49 = sadd.s32 %s29, %s31
      %p50 = scmp.lt.s32.totalorder %s49, 0
      %s51 = scalar_select %p50, %s49, 0
      %s52 = sadd.s32 %s48, %s40
      %p53 = scmp.lt.s32.totalorder %s52, 0
      %s54 = scalar_select %p53, %s52, 0
      %s55 = ssub.s32 %s30, %s44
      %s56 = ssub.s32 %s51, %s54
      %s57 = sor.u32 %s55, %s56
      %p58 = scmp.eq.s32.totalorder %s57, 0
      %s60 = sadd.s32 %s59, 1
      %s61 = scalar_select %p58, %s59, %s60
      %p64 = pneg %p58
      %p65 = scmp.eq.s32.totalorder %s22, 1
      %p66 = por %p64, %p65
      %p67 = scmp.ne.s32.totalorder %s59, %s62
      %p68 = scmp.eq.s32.totalorder %s22, 0
      %p69 = por %p67, %p68
      %p70 = scmp.ne.s32.totalorder %s59, %s62
      %p71 = scmp.eq.s32.totalorder %s27, 1
      %p72 = por %p70, %p71
      %p73 = scmp.ne.s32.totalorder %s62, %s63
      %p74 = scmp.eq.s32.totalorder %s27, 0
      %p75 = por %p73, %p74
      %p76 = scmp.ne.s32.totalorder %s62, %s63
      %p77 = scmp.eq.s32.totalorder %s28, 1
      %p78 = por %p76, %p77
      %p80 = scmp.ne.s32.totalorder %s63, %s79
      %p81 = scmp.eq.s32.totalorder %s28, 0
      %p82 = por %p80, %p81
      %s83 = sadd.s32 %s29, %s31
      %p84 = scmp.lt.s32.totalorder %s83, 0
      %s85 = scalar_select %p84, %s83, 0
      %s86 = sadd.s32 %s48, %s40
      %p87 = scmp.lt.s32.totalorder %s86, 0
      %s88 = scalar_select %p87, %s86, 0
      %s89 = ssub.s32 %s30, %s44
      %s90 = ssub.s32 %s85, %s88
      %s91 = sor.u32 %s89, %s90
      %p92 = scmp.eq.s32.totalorder %s91, 0
      %s94 = sadd.s32 %s93, 1
      %s95 = scalar_select %p92, %s93, %s94
      %p98 = pneg %p92
      %p99 = scmp.eq.s32.totalorder %s22, 1
      %p100 = por %p98, %p99
      %p101 = scmp.ne.s32.totalorder %s93, %s96
      %p102 = scmp.eq.s32.totalorder %s22, 0
      %p103 = por %p101, %p102
      %p104 = scmp.ne.s32.totalorder %s93, %s96
      %p105 = scmp.eq.s32.totalorder %s27, 1
      %p106 = por %p104, %p105
      %p107 = scmp.ne.s32.totalorder %s96, %s97
      %p108 = scmp.eq.s32.totalorder %s27, 0
      %p109 = por %p107, %p108
      %p110 = scmp.ne.s32.totalorder %s96, %s97
      %p111 = scmp.eq.s32.totalorder %s28, 1
      %p112 = por %p110, %p111
      %p114 = scmp.ne.s32.totalorder %s97, %s113
      %p115 = scmp.eq.s32.totalorder %s28, 0
      %p116 = por %p114, %p115
      %s117 = ssub.s32 %s29, %s48
      %s118 = ssub.s32 %s30, %s44
      %s119 = sor.u32 %s117, %s118
      %p120 = scmp.eq.s32.totalorder %s119, 0
      %s122 = sadd.s32 %s121, 1
      %s123 = scalar_select %p120, %s121, %s122
      %p126 = pneg %p120
      %p127 = scmp.eq.s32.totalorder %s22, 1
      %p128 = por %p126, %p127
      %p129 = scmp.ne.s32.totalorder %s121, %s124
      %p130 = scmp.eq.s32.totalorder %s22, 0
      %p131 = por %p129, %p130
      %p132 = scmp.ne.s32.totalorder %s121, %s124
      %p133 = scmp.eq.s32.totalorder %s27, 1
      %p134 = por %p132, %p133
      %p135 = scmp.ne.s32.totalorder %s124, %s125
      %p136 = scmp.eq.s32.totalorder %s27, 0
      %p137 = por %p135, %p136
      %p138 = scmp.ne.s32.totalorder %s124, %s125
      %p139 = scmp.eq.s32.totalorder %s28, 1
      %p140 = por %p138, %p139
      %p142 = scmp.ne.s32.totalorder %s125, %s141
      %p143 = scmp.eq.s32.totalorder %s28, 0
      %p144 = por %p142, %p143
      %s145 = ssub.s32 %s29, %s48
      %s146 = ssub.s32 %s30, %s44
      %s147 = sor.u32 %s145, %s146
      %p148 = scmp.eq.s32.totalorder %s147, 0
      %s150 = sadd.s32 %s149, 1
      %s151 = scalar_select %p148, %s149, %s150
      %p154 = pneg %p148
      %p155 = scmp.eq.s32.totalorder %s22, 1
      %p156 = por %p154, %p155
      %p157 = scmp.ne.s32.totalorder %s149, %s152
      %p158 = scmp.eq.s32.totalorder %s22, 0
      %p159 = por %p157, %p158
      %p160 = scmp.ne.s32.totalorder %s149, %s152
      %p161 = scmp.eq.s32.totalorder %s27, 1
      %p162 = por %p160, %p161
      %p163 = scmp.ne.s32.totalorder %s152, %s153
      %p164 = scmp.eq.s32.totalorder %s27, 0
      %p165 = por %p163, %p164
      %p166 = scmp.ne.s32.totalorder %s152, %s153
      %p167 = scmp.eq.s32.totalorder %s28, 1
      %p168 = por %p166, %p167
      %p170 = scmp.ne.s32.totalorder %s153, %s169
      %p171 = scmp.eq.s32.totalorder %s28, 0
      %p172 = por %p170, %p171
      %p173 = scmp.le.s32.totalorder 1, %s22
      %p174 = scmp.lt.s32.totalorder %s22, 3
      %p175 = pnand %p173, %p174
      %p176 = pneg %p175
      // Predicated region
      $region9: #{tpu_custom_call.1} parent=5 // pred_check
        _
      $region10: #{tpu_custom_call.1} parent=5 // pred_check_branch
        %178 = sbr.rel (%p175) target = $region12
      $region11: #{tpu_custom_call.1} parent=5 // pred_region
        %s179 = ssub.s32 %s22, 1
      $region12: #{tpu_custom_call.1} parent=5 // pred_fallthru
        _
      %p180 = scmp.lt.s32.totalorder %s22, 2
      // Predicated region
      $region13: #{tpu_custom_call.1} parent=5 // pred_check
        %p181 = pneg %p180
      $region14: #{tpu_custom_call.1} parent=5 // pred_check_branch
        %183 = sbr.rel (%p181) target = $region16
      $region15: #{tpu_custom_call.1} parent=5 // pred_region
        // Predicated region
        $region17: #{tpu_custom_call.1} parent=15 // pred_check
          %p184 = pneg %p69
        $region18: #{tpu_custom_call.1} parent=15 // pred_check_branch
          %186 = sbr.rel (%p184) target = $region20
        $region19: #{tpu_custom_call.1} parent=15 // pred_region
          %s187 = sand.u32 %s59, 1
          %s188 = scalar_lea.sflag [#allocation3], %s187
          %s189 = sand.u32 %s59, 1
          %s190 = smul.addr %s189, 16
          %s191 = scalar_lea.vmem [#allocation2], %s190
          %s192 = sadd.s32 %s29, %s31
          %p193 = scmp.lt.s32.totalorder %s192, 0
          %s194 = scalar_select %p193, %s192, 0
          %s195 = smul.u32 2, %s30
          %197 = vsyncadd %s188, 0
          %s198 = sadd.s32 %s194, %s195
          %s199 = smul.addr %s198, 8
          %s200 = scalar_lea.hbm %s0, %s199
          %s201 = sshll.u32 %s200, 4
          %s202 = int_to_ptr.hbm [resolvable:$true] %s201
          %s203 = sshll.u32 %s191, 4
          %s204 = int_to_ptr.vmem [resolvable:$true] %s203
          %209 = dma.hbm_to_vmem [thread:$0]  %s202, 256, %s204, %s188, 128, 128, 8
        $region20: #{tpu_custom_call.1} parent=15 // pred_fallthru
          _
        // Predicated region
        $region21: #{tpu_custom_call.1} parent=15 // pred_check
          %p210 = pneg %p103
        $region22: #{tpu_custom_call.1} parent=15 // pred_check_branch
          %212 = sbr.rel (%p210) target = $region24
        $region23: #{tpu_custom_call.1} parent=15 // pred_region
          %s213 = sand.u32 %s93, 1
          %s214 = scalar_lea.sflag [#allocation6], %s213
          %s215 = sand.u32 %s93, 1
          %s216 = smul.addr %s215, 16
          %s217 = scalar_lea.vmem [#allocation5], %s216
          %s218 = sadd.s32 %s29, %s31
          %p219 = scmp.lt.s32.totalorder %s218, 0
          %s220 = scalar_select %p219, %s218, 0
          %s221 = smul.u32 2, %s30
          %223 = vsyncadd %s214, 0
          %s224 = sadd.s32 %s220, %s221
          %s225 = smul.addr %s224, 8
          %s226 = scalar_lea.hbm %s1, %s225
          %s227 = sshll.u32 %s226, 4
          %s228 = int_to_ptr.hbm [resolvable:$true] %s227
          %s229 = sshll.u32 %s217, 4
          %s230 = int_to_ptr.vmem [resolvable:$true] %s229
          %235 = dma.hbm_to_vmem [thread:$0]  %s228, 256, %s230, %s214, 128, 128, 8
        $region24: #{tpu_custom_call.1} parent=15 // pred_fallthru
          _
      $region16: #{tpu_custom_call.1} parent=5 // pred_fallthru
        _
      %p236 = scmp.le.s32.totalorder 1, %s22
      %p237 = scmp.lt.s32.totalorder %s22, 3
      %p238 = pnand %p236, %p237
      %p239 = pneg %p238
      // Predicated region
      $region25: #{tpu_custom_call.1} parent=5 // pred_check
        _
      $region26: #{tpu_custom_call.1} parent=5 // pred_check_branch
        %241 = sbr.rel (%p238) target = $region28
      $region27: #{tpu_custom_call.1} parent=5 // pred_region
        %s242 = ssub.s32 %s22, 1
        %s243 = sand.u32 %s62, 1
        %s244 = scalar_lea.sflag [#allocation3], %s243
        %s245 = sand.u32 %s62, 1
        %s246 = smul.addr %s245, 16
        %s247 = scalar_lea.vmem [#allocation2], %s246
        // Predicated region
        $region29: #{tpu_custom_call.1} parent=27 // pred_check
          %p248 = pneg %p75
        $region30: #{tpu_custom_call.1} parent=27 // pred_check_branch
          %250 = sbr.rel (%p248) target = $region32
        $region31: #{tpu_custom_call.1} parent=27 // pred_region
          %252 = dma.done %s244, 256
        $region32: #{tpu_custom_call.1} parent=27 // pred_fallthru
          _
        %s253 = sand.u32 %s96, 1
        %s254 = scalar_lea.sflag [#allocation6], %s253
        %s255 = sand.u32 %s96, 1
        %s256 = smul.addr %s255, 16
        %s257 = scalar_lea.vmem [#allocation5], %s256
        // Predicated region
        $region33: #{tpu_custom_call.1} parent=27 // pred_check
          %p258 = pneg %p109
        $region34: #{tpu_custom_call.1} parent=27 // pred_check_branch
          %260 = sbr.rel (%p258) target = $region36
        $region35: #{tpu_custom_call.1} parent=27 // pred_region
          %262 = dma.done %s254, 256
        $region36: #{tpu_custom_call.1} parent=27 // pred_fallthru
          _
        %s263 = sand.u32 %s62, 1
        %s264 = scalar_lea.sflag [#allocation3], %s263
        %s265 = sand.u32 %s62, 1
        %s266 = smul.addr %s265, 16
        %s267 = scalar_lea.vmem [#allocation2], %s266
        %p268 = pneg %p75
        %p269 = pneg %p72
        %s270 = sand.u32 %s96, 1
        %s271 = scalar_lea.sflag [#allocation6], %s270
        %s272 = sand.u32 %s96, 1
        %s273 = smul.addr %s272, 16
        %s274 = scalar_lea.vmem [#allocation5], %s273
        %p275 = pneg %p109
        %p276 = pneg %p106
        %p277 = pneg %p137
        %p278 = pneg %p134
        %s279 = sand.u32 %s124, 1
        %s280 = scalar_lea.sflag [#allocation4], %s279
        %s281 = sand.u32 %s124, 1
        %s282 = smul.addr %s281, 8
        %s283 = scalar_lea.vmem [#allocation7], %s282
        %p284 = pneg %p165
        %p285 = pneg %p162
        %s286 = sand.u32 %s152, 1
        %s287 = scalar_lea.sflag [#allocation9], %s286
        %s288 = sand.u32 %s152, 1
        %s289 = smul.addr %s288, 8
        %s290 = scalar_lea.vmem [#allocation8], %s289
        %s291 = sadd.s32 %s32, %s34
        %p292 = scmp.lt.s32.totalorder %s291, 0
        %s293 = scalar_select %p292, %s291, 0
        %s294 = smul.u32 2, %s33
        %s295 = sadd.s32 %s32, %s34
        %p296 = scmp.lt.s32.totalorder %s295, 0
        %s297 = scalar_select %p296, %s295, 0
        %s298 = smul.u32 2, %s33
        %p299 = scmp.eq.s32.totalorder %s34, 0
        // Predicated region
        $region37: #{tpu_custom_call.1} parent=27 // pred_check
          %p300 = pneg %p299
        $region38: #{tpu_custom_call.1} parent=27 // pred_check_branch
          %302 = sbr.rel (%p300) target = $region40
        $region39: #{tpu_custom_call.1} parent=27 // pred_region
          %303 = vst [vmem:[%s283] sm:$0xff] 0.0
          %304 = vst [vmem:[%s290] sm:$0xff] 0.0
        $region40: #{tpu_custom_call.1} parent=27 // pred_fallthru
          _
        %v305 = vld [vmem:[%s247] sm:$0xff]
        %v306 = vld [vmem:[%s247 + $0x8] sm:$0xff]
        %v307 = vld [vmem:[%s257] sm:$0xff]
        %v308 = vld [vmem:[%s257 + $0x8] sm:$0xff]
        %v309 = vsub.f32 %v305, %v307
        %v310 = vsub.f32 %v306, %v308
        %v311 = vand.u32 2147483647, %v309
        %v312 = vand.u32 2147483647, %v310
        %v313 = vadd.f32 %v311, %v312
        %v314 = vadd.f32 %v313, 0.0
        %v315 = vmul.f32 %v309, %v309
        %v316 = vmul.f32 %v310, %v310
        %v317 = vadd.f32 %v315, %v316
        %v318 = vrsqrt.pop %v317
        %v319 = vmul.f32 %v318, %v317
        %v320 = vmul.f32 %v319, %v318
        %v321 = vmul.f32 0.5, %v320
        %v322 = vsub.f32 1.5, %v321
        %v323 = vmul.f32 %v318, %v322
        %v324 = vmul.f32 %v317, %v323
        %vm325 = vcmp.eq.f32.partialorder %v317, inf
        %v326 = vsel %vm325, %v317, %v324
        %vm327 = vcmp.eq.f32.partialorder %v317, 0.0
        %v328 = vand.u32 %v317, 2147483648
        %v329 = vsel %vm327, %v328, %v326
        %v330 = vadd.f32 %v329, 0.0
        %v331 = vadd.f32 %v330, 0.0
        %v332 = vld [vmem:[%s283] sm:$0xff]
        %v333 = vadd.f32 %v332, %v314
        %334 = vst [vmem:[%s283] sm:$0xff] %v333
        %v335 = vld [vmem:[%s290] sm:$0xff]
        %v336 = vadd.f32 %v335, %v331
        %337 = vst [vmem:[%s290] sm:$0xff] %v336
        %s338 = sand.u32 %s124, 1
        %s339 = scalar_lea.sflag [#allocation4], %s338
        %s340 = sand.u32 %s124, 1
        %s341 = smul.addr %s340, 8
        %s342 = scalar_lea.vmem [#allocation7], %s341
        %s343 = sand.u32 %s152, 1
        %s344 = scalar_lea.sflag [#allocation9], %s343
        %s345 = sand.u32 %s152, 1
        %s346 = smul.addr %s345, 8
        %s347 = scalar_lea.vmem [#allocation8], %s346
        // Predicated region
        $region41: #{tpu_custom_call.1} parent=27 // pred_check
          %p348 = pneg %p134
        $region42: #{tpu_custom_call.1} parent=27 // pred_check_branch
          %350 = sbr.rel (%p348) target = $region44
        $region43: #{tpu_custom_call.1} parent=27 // pred_region
          %352 = vsyncadd %s339, 0
          %s353 = smul.addr %s32, 2
          %s354 = sadd.s32 %s33, %s353
          %s355 = smul.addr %s354, 8
          %s356 = scalar_lea.hbm %s2, %s355
          %s358 = sshll.u32 %s342, 4
          %s359 = int_to_ptr.vmem [resolvable:$true] %s358
          %s360 = sshll.u32 %s356, 4
          %s361 = int_to_ptr.hbm [resolvable:$true] %s360
          %363 = dma.vmem_to_hbm [thread:$0]  %s359, 128, %s361, %s339
        $region44: #{tpu_custom_call.1} parent=27 // pred_fallthru
          _
        // Predicated region
        $region45: #{tpu_custom_call.1} parent=27 // pred_check
          %p364 = pneg %p162
        $region46: #{tpu_custom_call.1} parent=27 // pred_check_branch
          %366 = sbr.rel (%p364) target = $region48
        $region47: #{tpu_custom_call.1} parent=27 // pred_region
          %368 = vsyncadd %s344, 0
          %s369 = smul.addr %s32, 2
          %s370 = sadd.s32 %s33, %s369
          %s371 = smul.addr %s370, 8
          %s372 = scalar_lea.hbm %s3, %s371
          %s374 = sshll.u32 %s347, 4
          %s375 = int_to_ptr.vmem [resolvable:$true] %s374
          %s376 = sshll.u32 %s372, 4
          %s377 = int_to_ptr.hbm [resolvable:$true] %s376
          %379 = dma.vmem_to_hbm [thread:$0]  %s375, 128, %s377, %s344
        $region48: #{tpu_custom_call.1} parent=27 // pred_fallthru
          _
      $region28: #{tpu_custom_call.1} parent=5 // pred_fallthru
        _
      %p380 = scmp.le.s32.totalorder 2, %s22
      // Predicated region
      $region49: #{tpu_custom_call.1} parent=5 // pred_check
        %p381 = pneg %p380
      $region50: #{tpu_custom_call.1} parent=5 // pred_check_branch
        %383 = sbr.rel (%p381) target = $region52
      $region51: #{tpu_custom_call.1} parent=5 // pred_region
        %s384 = ssub.s32 %s22, 2
        // Predicated region
        $region53: #{tpu_custom_call.1} parent=51 // pred_check
          %p385 = pneg %p140
        $region54: #{tpu_custom_call.1} parent=51 // pred_check_branch
          %387 = sbr.rel (%p385) target = $region56
        $region55: #{tpu_custom_call.1} parent=51 // pred_region
          %s388 = sand.u32 %s125, 1
          %s389 = scalar_lea.sflag [#allocation4], %s388
          %s390 = sand.u32 %s125, 1
          %s391 = smul.addr %s390, 8
          %s392 = scalar_lea.vmem [#allocation7], %s391
          %394 = dma.done %s389, 128
        $region56: #{tpu_custom_call.1} parent=51 // pred_fallthru
          _
        // Predicated region
        $region57: #{tpu_custom_call.1} parent=51 // pred_check
          %p395 = pneg %p168
        $region58: #{tpu_custom_call.1} parent=51 // pred_check_branch
          %397 = sbr.rel (%p395) target = $region60
        $region59: #{tpu_custom_call.1} parent=51 // pred_region
          %s398 = sand.u32 %s153, 1
          %s399 = scalar_lea.sflag [#allocation9], %s398
          %s400 = sand.u32 %s153, 1
          %s401 = smul.addr %s400, 8
          %s402 = scalar_lea.vmem [#allocation8], %s401
          %404 = dma.done %s399, 128
        $region60: #{tpu_custom_call.1} parent=51 // pred_fallthru
          _
      $region52: #{tpu_custom_call.1} parent=5 // pred_fallthru
        _
    $region6: #{tpu_custom_call.1} parent=1 // loop_footer
      %s26 = sadd.s32 1, %s22
    $region7: #{tpu_custom_call.1} parent=1 // loop_footer_branch
      %21 = sbr.rel target = $region3
    $region8: #{tpu_custom_call.1} parent=1 // loop_exit
      _
    %405 = vsyncpa [#allocation3], 1
    %s406 = scalar_lea.sflag [#allocation3], 1
    %407 = vsyncpa %s406, 1
    %408 = vsyncpa [#allocation6], 1
    %s409 = scalar_lea.sflag [#allocation6], 1
    %410 = vsyncpa %s409, 1
    %411 = vsyncpa [#allocation4], 1
    %s412 = scalar_lea.sflag [#allocation4], 1
    %413 = vsyncpa %s412, 1
    %414 = vsyncpa [#allocation9], 1
    %s415 = scalar_lea.sflag [#allocation9], 1
    %416 = vsyncpa %s415, 1

</llo_original>
